<compile_context>
chip_gen: v7x
topology: tpu7x:2x2x1
jax: 0.10.0
libtpu: 0.0.40
codegen_flags: <defaults>
</compile_context>

<pallas_src>
import jax
import jax.numpy as jnp
from jax.experimental import pallas as pl
from jax.experimental.pallas import tpu as pltpu

MLP_HIDDEN = 100
HIDDEN2 = 50
LANE = 128


def _round_up(n, m):
    return ((n + m - 1) // m) * m


def _cdiv(a, b):
    return (a + b - 1) // b


def _pad_to(a, shape):
    pads = [(0, s - d) for s, d in zip(shape, a.shape)]
    return jnp.pad(a, pads)


def mlp_kernel(x_ref, w1_ref, b1_ref, w2_ref, b2_ref, w3_ref, b3_ref,
               y_ref, h2_ref):
    # x_ref: (TB, input_dim). Weights lane-padded for the internal matmuls;
    # outputs stored at true width (y: output_dim lanes, h2: 50 lanes).
    x = x_ref[...]

    # Layer 1: Linear(input_dim -> 128pad) + ReLU  (f32 accumulate, f32 VPU math)
    h1 = jnp.dot(x, w1_ref[...], preferred_element_type=jnp.float32) + b1_ref[...]
    h1 = jnp.maximum(h1, 0.0)

    # Layer 2: Linear(128pad -> 128pad) + ReLU
    h2 = jnp.dot(h1.astype(w2_ref.dtype), w2_ref[...],
                 preferred_element_type=jnp.float32) + b2_ref[...]
    h2 = jnp.maximum(h2, 0.0)

    # Layer 3: Linear(128pad -> output_dim), no activation
    y = jnp.dot(h2.astype(w3_ref.dtype), w3_ref[...],
                preferred_element_type=jnp.float32) + b3_ref[...]

    # True-width stores (no padded HBM writeback).
    y_ref[...] = y.astype(y_ref.dtype)
    h2_ref[...] = h2[:, :h2_ref.shape[1]].astype(h2_ref.dtype)


def _pick_batch_tiling(batch, batch_tile):
    """Return (tb, grid_n) with no row padding; tail is Pallas-masked."""
    if batch <= batch_tile:
        return batch, 1          # single block == full batch (legal block dim)
    grid_n = _cdiv(batch, batch_tile)
    if grid_n % 2:
        grid_n += 1              # balance across v7x's two TensorCores
    tb = _round_up(_cdiv(batch, grid_n), 8)
    grid_n = _cdiv(batch, tb)
    return tb, grid_n


def mlp_forward(x, params, *, batch_tile=2048, use_bf16=False, out_dtype=None):
    """x: (batch, ...) -> flattened to (batch, input_dim). Returns (y_pred, h_2)."""
    batch = x.shape[0]
    x2d = x.reshape(batch, -1)
    input_dim = x2d.shape[1]
    if out_dtype is None:
        out_dtype = x2d.dtype

    w1, b1, w2, b2, w3, b3 = params
    output_dim = w3.shape[0]

    # Lane-pad hidden dims (internal matmuls only; exact because pads are zero).
    h1p = _round_up(MLP_HIDDEN, LANE)   # 128
    h2p = _round_up(HIDDEN2, LANE)      # 128

    w1t = _pad_to(w1.T, (input_dim, h1p))
    w2t = _pad_to(w2.T, (h1p, h2p))
    w3t = _pad_to(w3.T, (h2p, output_dim))
    b1r = _pad_to(b1.reshape(1, -1), (1, h1p)).astype(jnp.float32)
    b2r = _pad_to(b2.reshape(1, -1), (1, h2p)).astype(jnp.float32)
    b3r = b3.reshape(1, -1).astype(jnp.float32)

    if use_bf16:
        # Halve streamed bytes; MXU takes bf16 natively, accumulate stays f32,
        # biases/ReLU stay f32 (v5e has no bf16 VPU path).
        x2d = x2d.astype(jnp.bfloat16)
        w1t = w1t.astype(jnp.bfloat16)
        w2t = w2t.astype(jnp.bfloat16)
        w3t = w3t.astype(jnp.bfloat16)

    tb, grid_n = _pick_batch_tiling(batch, batch_tile)

    resident = lambda i: (0, 0)   # weights/biases: same block every grid step

    y, h2 = pl.pallas_call(
        mlp_kernel,
        out_shape=(
            jax.ShapeDtypeStruct((batch, output_dim), out_dtype),
            jax.ShapeDtypeStruct((batch, HIDDEN2), out_dtype),
        ),
        grid_spec=pltpu.PrefetchScalarGridSpec(
            num_scalar_prefetch=0,
            grid=(grid_n,),
            in_specs=[
                pl.BlockSpec((tb, input_dim), lambda i: (i, 0)),      # x (streamed)
                pl.BlockSpec((input_dim, h1p), resident),             # w1
                pl.BlockSpec((1, h1p), resident),                     # b1
                pl.BlockSpec((h1p, h2p), resident),                   # w2
                pl.BlockSpec((1, h2p), resident),                     # b2
                pl.BlockSpec((h2p, output_dim), resident),            # w3
                pl.BlockSpec((1, output_dim), resident),              # b3
            ],
            out_specs=(
                pl.BlockSpec((tb, output_dim), lambda i: (i, 0)),     # y (true width)
                pl.BlockSpec((tb, HIDDEN2), lambda i: (i, 0)),        # h2 (true width)
            ),
        ),
        compiler_params=pltpu.CompilerParams(
            dimension_semantics=("parallel",),   # shard batch over v7x's 2 TCs
        ),
    )(x2d, w1t, b1r, w2t, b2r, w3t, b3r)

    return y, h2


def init_params(key, input_dim, output_dim):
    """Deterministic init mimicking torch.nn.Linear default (uniform +-1/sqrt(fan_in))."""
    def linear_init(k, fan_in, fan_out):
        kw, kb = jax.random.split(k)
        bound = 1.0 / jnp.sqrt(fan_in)
        w = jax.random.uniform(kw, (fan_out, fan_in), jnp.float32, -bound, bound)
        b = jax.random.uniform(kb, (fan_out,), jnp.float32, -bound, bound)
        return w, b

    k1, k2, k3 = jax.random.split(key, 3)
    w1, b1 = linear_init(k1, input_dim, MLP_HIDDEN)
    w2, b2 = linear_init(k2, MLP_HIDDEN, HIDDEN2)
    w3, b3 = linear_init(k3, HIDDEN2, output_dim)
    return (w1, b1, w2, b2, w3, b3)


def _reference(x, params):
    w1, b1, w2, b2, w3, b3 = params
    x2d = x.reshape(x.shape[0], -1)
    h1 = jnp.maximum(x2d @ w1.T + b1, 0.0)
    h2 = jnp.maximum(h1 @ w2.T + b2, 0.0)
    y = h2 @ w3.T + b3
    return y, h2


if __name__ == "__main__":
    key = jax.random.PRNGKey(0)
    k_params, k_x1, k_x2 = jax.random.split(key, 3)

    output_dim = 16

    # --- Small case (batch=2, multi-dim input exercising the x.view flatten) ---
    x = jax.random.normal(k_x1, (2, 4, 8), jnp.float32)   # input_dim = 32
    input_dim = 4 * 8
    params = init_params(k_params, input_dim, output_dim)

    y_pred, h_2 = mlp_forward(x, params)
    jax.block_until_ready((y_pred, h_2))

    y_ref, h2_ref = _reference(x, params)
    assert y_pred.shape == (2, output_dim)
    assert h_2.shape == (2, HIDDEN2)
    assert jnp.allclose(y_pred, y_ref, atol=1e-5), "y_pred mismatch (small)"
    assert jnp.allclose(h_2, h2_ref, atol=1e-5), "h_2 mismatch (small)"

    # --- Larger batch: multi-step grid, resident weights, masked ragged tail ---
    big_batch = 2500                      # -> grid=(2,), tb=1256, tail masked
    xb = jax.random.normal(k_x2, (big_batch, input_dim), jnp.float32)
    yb, h2b = mlp_forward(xb, params, batch_tile=2048)
    jax.block_until_ready((yb, h2b))

    yb_ref, h2b_ref = _reference(xb, params)
    assert yb.shape == (big_batch, output_dim)
    assert h2b.shape == (big_batch, HIDDEN2)
    assert jnp.allclose(yb, yb_ref, atol=1e-4, rtol=1e-4), "y_pred mismatch (big)"
    assert jnp.allclose(h2b, h2b_ref, atol=1e-4, rtol=1e-4), "h_2 mismatch (big)"

    # --- bf16 streaming + bf16 writeback path (loose tolerances: bf16 mantissa) ---
    yb16, h2b16 = mlp_forward(xb, params, batch_tile=2048,
                              use_bf16=True, out_dtype=jnp.bfloat16)
    jax.block_until_ready((yb16, h2b16))
    assert yb16.dtype == jnp.bfloat16 and h2b16.dtype == jnp.bfloat16
    assert jnp.allclose(yb16.astype(jnp.float32), yb_ref, atol=5e-2, rtol=5e-2), \
        "y_pred mismatch (bf16)"
    assert jnp.allclose(h2b16.astype(jnp.float32), h2b_ref, atol=5e-2, rtol=5e-2), \
        "h_2 mismatch (bf16)"

    print("KERNEL_OK")
</pallas_src>

<mosaic_0001>
module attributes {stable_mosaic.version = 11 : i64} {
  func.func @mlp_kernel(%arg0: i32, %arg1: memref<2x32xf32, #tpu.memory_space<vmem>>, %arg2: memref<32x128xf32, #tpu.memory_space<vmem>>, %arg3: memref<1x128xf32, #tpu.memory_space<vmem>>, %arg4: memref<128x128xf32, #tpu.memory_space<vmem>>, %arg5: memref<1x128xf32, #tpu.memory_space<vmem>>, %arg6: memref<128x16xf32, #tpu.memory_space<vmem>>, %arg7: memref<1x16xf32, #tpu.memory_space<vmem>>, %arg8: memref<2x16xf32, #tpu.memory_space<vmem>>, %arg9: memref<2x50xf32, #tpu.memory_space<vmem>>) attributes {dimension_semantics = [#tpu.dimension_semantics<parallel>], iteration_bounds = array<i64: 1>, scalar_prefetch = 0 : i64, scratch_operands = 0 : i64, tpu.core_type = #tpu.core_type<tc>, window_params = [{transform_indices = @transform_0, window_bounds = array<i64: 2, 32>}, {pipeline_mode = #tpu.pipeline_mode<synchronous>, transform_indices = @transform_1, window_bounds = array<i64: 32, 128>}, {pipeline_mode = #tpu.pipeline_mode<synchronous>, transform_indices = @transform_2, window_bounds = array<i64: 1, 128>}, {pipeline_mode = #tpu.pipeline_mode<synchronous>, transform_indices = @transform_3, window_bounds = array<i64: 128, 128>}, {pipeline_mode = #tpu.pipeline_mode<synchronous>, transform_indices = @transform_4, window_bounds = array<i64: 1, 128>}, {pipeline_mode = #tpu.pipeline_mode<synchronous>, transform_indices = @transform_5, window_bounds = array<i64: 128, 16>}, {pipeline_mode = #tpu.pipeline_mode<synchronous>, transform_indices = @transform_6, window_bounds = array<i64: 1, 16>}, {transform_indices = @transform_7, window_bounds = array<i64: 2, 16>}, {transform_indices = @transform_8, window_bounds = array<i64: 2, 50>}]} {
    %c0 = arith.constant 0 : index
    %c0_0 = arith.constant 0 : index
    %0 = vector.load %arg1[%c0, %c0_0] : memref<2x32xf32, #tpu.memory_space<vmem>>, vector<2x32xf32>
    %c0_1 = arith.constant 0 : index
    %c0_2 = arith.constant 0 : index
    %1 = vector.load %arg2[%c0_1, %c0_2] : memref<32x128xf32, #tpu.memory_space<vmem>>, vector<32x128xf32>
    %cst = arith.constant dense<0.000000e+00> : vector<2x128xf32>
    %2 = tpu.matmul %0, %1, %cst {dimension_numbers = #tpu.dot_dimension_numbers<[1], [0], [0], [1], [0, 0, 1, 1], [], []>} : vector<2x32xf32>, vector<32x128xf32>, vector<2x128xf32> -> vector<2x128xf32>
    %c0_3 = arith.constant 0 : index
    %c0_4 = arith.constant 0 : index
    %3 = vector.load %arg3[%c0_3, %c0_4] : memref<1x128xf32, #tpu.memory_space<vmem>>, vector<1x128xf32>
    %4 = vector.broadcast %3 : vector<1x128xf32> to vector<2x128xf32>
    %5 = arith.addf %2, %4 : vector<2x128xf32>
    %cst_5 = arith.constant 0.000000e+00 : f32
    %6 = vector.broadcast %cst_5 : f32 to vector<2x128xf32>
    %7 = arith.maximumf %5, %6 : vector<2x128xf32>
    %c0_6 = arith.constant 0 : index
    %c0_7 = arith.constant 0 : index
    %8 = vector.load %arg4[%c0_6, %c0_7] : memref<128x128xf32, #tpu.memory_space<vmem>>, vector<128x128xf32>
    %cst_8 = arith.constant dense<0.000000e+00> : vector<2x128xf32>
    %9 = tpu.matmul %7, %8, %cst_8 {dimension_numbers = #tpu.dot_dimension_numbers<[1], [0], [0], [1], [0, 0, 1, 1], [], []>} : vector<2x128xf32>, vector<128x128xf32>, vector<2x128xf32> -> vector<2x128xf32>
    %c0_9 = arith.constant 0 : index
    %c0_10 = arith.constant 0 : index
    %10 = vector.load %arg5[%c0_9, %c0_10] : memref<1x128xf32, #tpu.memory_space<vmem>>, vector<1x128xf32>
    %11 = vector.broadcast %10 : vector<1x128xf32> to vector<2x128xf32>
    %12 = arith.addf %9, %11 : vector<2x128xf32>
    %cst_11 = arith.constant 0.000000e+00 : f32
    %13 = vector.broadcast %cst_11 : f32 to vector<2x128xf32>
    %14 = arith.maximumf %12, %13 : vector<2x128xf32>
    %c0_12 = arith.constant 0 : index
    %c0_13 = arith.constant 0 : index
    %15 = vector.load %arg6[%c0_12, %c0_13] : memref<128x16xf32, #tpu.memory_space<vmem>>, vector<128x16xf32>
    %cst_14 = arith.constant dense<0.000000e+00> : vector<2x16xf32>
    %16 = tpu.matmul %14, %15, %cst_14 {dimension_numbers = #tpu.dot_dimension_numbers<[1], [0], [0], [1], [0, 0, 1, 1], [], []>} : vector<2x128xf32>, vector<128x16xf32>, vector<2x16xf32> -> vector<2x16xf32>
    %c0_15 = arith.constant 0 : index
    %c0_16 = arith.constant 0 : index
    %17 = vector.load %arg7[%c0_15, %c0_16] : memref<1x16xf32, #tpu.memory_space<vmem>>, vector<1x16xf32>
    %18 = vector.broadcast %17 : vector<1x16xf32> to vector<2x16xf32>
    %19 = arith.addf %16, %18 : vector<2x16xf32>
    %c0_17 = arith.constant 0 : index
    %c0_18 = arith.constant 0 : index
    %20 = vector.load %arg8[%c0_17, %c0_18] : memref<2x16xf32, #tpu.memory_space<vmem>>, vector<2x16xf32>
    tpu.vector_store %arg8[%c0_17, %c0_18], %19 {strides = array<i32>} : memref<2x16xf32, #tpu.memory_space<vmem>>, vector<2x16xf32>,
    %21 = vector.extract_strided_slice %14 {offsets = [0, 0], sizes = [2, 50], strides = [1, 1]} : vector<2x128xf32> to vector<2x50xf32>
    %c0_19 = arith.constant 0 : index
    %c0_20 = arith.constant 0 : index
    %22 = vector.load %arg9[%c0_19, %c0_20] : memref<2x50xf32, #tpu.memory_space<vmem>>, vector<2x50xf32>
    tpu.vector_store %arg9[%c0_19, %c0_20], %21 {strides = array<i32>} : memref<2x50xf32, #tpu.memory_space<vmem>>, vector<2x50xf32>,
    return
  }
  func.func @transform_0(%arg0: i32) -> (i32, i32) {
    %c0_i32 = arith.constant 0 : i32
    %c0_i32_0 = arith.constant 0 : i32
    return %arg0, %c0_i32 : i32, i32
  }
  func.func @transform_1(%arg0: i32) -> (i32, i32) {
    %c0_i32 = arith.constant 0 : i32
    %c0_i32_0 = arith.constant 0 : i32
    %c0_i32_1 = arith.constant 0 : i32
    return %c0_i32, %c0_i32_0 : i32, i32
  }
  func.func @transform_2(%arg0: i32) -> (i32, i32) {
    %c0_i32 = arith.constant 0 : i32
    %c0_i32_0 = arith.constant 0 : i32
    %c0_i32_1 = arith.constant 0 : i32
    return %c0_i32, %c0_i32_0 : i32, i32
  }
  func.func @transform_3(%arg0: i32) -> (i32, i32) {
    %c0_i32 = arith.constant 0 : i32
    %c0_i32_0 = arith.constant 0 : i32
    %c0_i32_1 = arith.constant 0 : i32
    return %c0_i32, %c0_i32_0 : i32, i32
  }
  func.func @transform_4(%arg0: i32) -> (i32, i32) {
    %c0_i32 = arith.constant 0 : i32
    %c0_i32_0 = arith.constant 0 : i32
    %c0_i32_1 = arith.constant 0 : i32
    return %c0_i32, %c0_i32_0 : i32, i32
  }
  func.func @transform_5(%arg0: i32) -> (i32, i32) {
    %c0_i32 = arith.constant 0 : i32
    %c0_i32_0 = arith.constant 0 : i32
    %c0_i32_1 = arith.constant 0 : i32
    return %c0_i32, %c0_i32_0 : i32, i32
  }
  func.func @transform_6(%arg0: i32) -> (i32, i32) {
    %c0_i32 = arith.constant 0 : i32
    %c0_i32_0 = arith.constant 0 : i32
    %c0_i32_1 = arith.constant 0 : i32
    return %c0_i32, %c0_i32_0 : i32, i32
  }
  func.func @transform_7(%arg0: i32) -> (i32, i32) {
    %c0_i32 = arith.constant 0 : i32
    %c0_i32_0 = arith.constant 0 : i32
    return %arg0, %c0_i32 : i32, i32
  }
  func.func @transform_8(%arg0: i32) -> (i32, i32) {
    %c0_i32 = arith.constant 0 : i32
    %c0_i32_0 = arith.constant 0 : i32
    return %arg0, %c0_i32 : i32, i32
  }
}

</mosaic_0001>

<llo_original>
// kernel: tpu_custom_call.1
$region0: #{tpu_custom_call.1}
  #allocation0 [shape = 'u32[]', space=smem, size = 0x4, offset = 0x4, fixed_abs, tag = 'smem constant byte address 0x4 - core index']
  #allocation1 [shape = 'u32[144,128]{1,0:T(1,128)}', space=vmem, size = 0x12000, scoped, tag = 'internal scratch']
  %s0 = inlined_call_operand.vmem [shape: f32[2,32], index: 0, kind: input, shape index: {}]
  %s1 = inlined_call_operand.hbm [shape: f32[32,128], index: 1, kind: input, shape index: {}]
  %s2 = inlined_call_operand.vmem [shape: f32[1,128], index: 2, kind: input, shape index: {}]
  %s3 = inlined_call_operand.vmem [shape: f32[128,128], index: 3, kind: input, shape index: {}]
  %s4 = inlined_call_operand.vmem [shape: f32[1,128], index: 4, kind: input, shape index: {}]
  %s5 = inlined_call_operand.vmem [shape: f32[128,16], index: 5, kind: input, shape index: {}]
  %s6 = inlined_call_operand.vmem [shape: f32[1,16], index: 6, kind: input, shape index: {}]
  %s7 = inlined_call_operand.hbm [shape: f32[2,16], index: 7, kind: output, shape index: {0}]
  %s8 = inlined_call_operand.hbm [shape: f32[2,50], index: 8, kind: output, shape index: {1}]
  %9 = xla_tuple %s7, %s8
  %s10 = sld [smem:[#allocation0]]
  $region50: #{tpu_custom_call.1} parent=0
    _
  %s12 = ssub.s32 1, %s10
  %s13 = scalar_select 0, %s12, %s10
  $region1: #{tpu_custom_call.1} parent=0
    #allocation2 [shape = 'u8[16384]{0}', space=vmem, size = 0x4000, scoped, tag = 'input window, operand 1, single buffered']
    #allocation3 [shape = 's32[1]{0}', space=sflag, size = 0x4, scoped, tag = 'scoped memory for tpu_custom_call.1']
    #allocation4 [shape = 's32[1]{0}', space=sflag, size = 0x4, scoped, tag = 'scoped memory for tpu_custom_call.1']
    #allocation5 [shape = 'u8[1024]{0}', space=vmem, size = 0x400, scoped, tag = 'output window, operand 0, single buffered']
    #allocation6 [shape = 'u8[1024]{0}', space=vmem, size = 0x400, scoped, tag = 'output window, operand 1, single buffered']
    #allocation7 [shape = 's32[1]{0}', space=sflag, size = 0x4, scoped, tag = 'scoped memory for tpu_custom_call.1']
    %14 = vsyncpa [#allocation3], 0
    %15 = vsyncpa [#allocation4], 0
    %16 = vsyncpa [#allocation7], 0
    // Predicated region
    $region2: #{tpu_custom_call.1} parent=1 // pred_check
      _
    $region3: #{tpu_custom_call.1} parent=1 // pred_check_branch
      %18 = sbr.rel (0) target = $region5
    $region4: #{tpu_custom_call.1} parent=1 // pred_region
      _
    $region5: #{tpu_custom_call.1} parent=1 // pred_fallthru
      _
    // Predicated region
    $region6: #{tpu_custom_call.1} parent=1 // pred_check
      _
    $region7: #{tpu_custom_call.1} parent=1 // pred_check_branch
      %20 = sbr.rel (0) target = $region9
    $region8: #{tpu_custom_call.1} parent=1 // pred_region
      %s22 = ssub.s32 512, 512
      %23 = vsyncadd [#allocation3], %s22
      %s24 = sshll.u32 [#allocation2], 4
      %s25 = int_to_ptr.vmem [resolvable:$true] %s24
      %30 = dma.hbm_to_vmem [thread:$0]  %s1, 512, %s25, [#allocation3], 128, 128, 8
    $region9: #{tpu_custom_call.1} parent=1 // pred_fallthru
      _
    // Predicated region
    $region10: #{tpu_custom_call.1} parent=1 // pred_check
      _
    $region11: #{tpu_custom_call.1} parent=1 // pred_check_branch
      %32 = sbr.rel (0) target = $region13
    $region12: #{tpu_custom_call.1} parent=1 // pred_region
      _
    $region13: #{tpu_custom_call.1} parent=1 // pred_fallthru
      _
    // Predicated region
    $region14: #{tpu_custom_call.1} parent=1 // pred_check
      _
    $region15: #{tpu_custom_call.1} parent=1 // pred_check_branch
      %34 = sbr.rel (0) target = $region17
    $region16: #{tpu_custom_call.1} parent=1 // pred_region
      _
    $region17: #{tpu_custom_call.1} parent=1 // pred_fallthru
      _
    // Predicated region
    $region18: #{tpu_custom_call.1} parent=1 // pred_check
      _
    $region19: #{tpu_custom_call.1} parent=1 // pred_check_branch
      %36 = sbr.rel (0) target = $region21
    $region20: #{tpu_custom_call.1} parent=1 // pred_region
      _
    $region21: #{tpu_custom_call.1} parent=1 // pred_fallthru
      _
    // Predicated region
    $region22: #{tpu_custom_call.1} parent=1 // pred_check
      _
    $region23: #{tpu_custom_call.1} parent=1 // pred_check_branch
      %38 = sbr.rel (0) target = $region25
    $region24: #{tpu_custom_call.1} parent=1 // pred_region
      _
    $region25: #{tpu_custom_call.1} parent=1 // pred_fallthru
      _
    // Predicated region
    $region26: #{tpu_custom_call.1} parent=1 // pred_check
      _
    $region27: #{tpu_custom_call.1} parent=1 // pred_check_branch
      %40 = sbr.rel (0) target = $region29
    $region28: #{tpu_custom_call.1} parent=1 // pred_region
      _
    $region29: #{tpu_custom_call.1} parent=1 // pred_fallthru
      _
    // Predicated region
    $region30: #{tpu_custom_call.1} parent=1 // pred_check
      _
    $region31: #{tpu_custom_call.1} parent=1 // pred_check_branch
      %42 = sbr.rel (0) target = $region33
    $region32: #{tpu_custom_call.1} parent=1 // pred_region
      %43 = dma.done [#allocation3], 512
    $region33: #{tpu_custom_call.1} parent=1 // pred_fallthru
      _
    %v44 = vld [vmem:[%s0] sm:$0x3]
    %v45 = vld [vmem:[#allocation2] sm:$0xff]
    %v46 = vld [vmem:[#allocation2 + $0x8] sm:$0xff]
    %v47 = vld [vmem:[#allocation2 + $0x10] sm:$0xff]
    %v48 = vld [vmem:[#allocation2 + $0x18] sm:$0xff]
    %v49 = vld [vmem:[%s2] sm:$0x1]
    %v51 = vlaneseq
    %v52 = vshrl.u32 %v51, 7
    %v53 = vsub.s32 0, %v52
    %v54 = vrot.slane %v49, %v53
    %vm56 = vcmask 261120
    %v58 = vsel %vm56, %v44, 0
    %60 = vmatprep.subr.mxu0 0.0
    %61 = vmatpush1.msra.mxu0 %v45
    %62 = vmatprep.subr.mxu0 0.0
    %63 = vmatpush1.msra.mxu0 %v46
    %64 = vmatprep.subr.mxu0 0.0
    %65 = vmatpush1.msra.mxu0 %v47
    %66 = vmatprep.subr.mxu0 0.0
    %67 = vmatpush1.msra.mxu0 %v48
    %68 = vmatprep.subr.mxu0 0.0
    %69 = vmatpush1.msra.mxu0 0.0
    %70 = vmatprep.subr.mxu0 0.0
    %71 = vmatpush1.msra.mxu0 0.0
    %72 = vmatprep.subr.mxu0 0.0
    %73 = vmatpush1.msra.mxu0 0.0
    %74 = vmatprep.subr.mxu0 0.0
    %75 = vmatpush1.msra.mxu0 0.0
    %76 = vmatprep.subr.mxu0 0.0
    %77 = vmatpush1.msra.mxu0 0.0
    %78 = vmatprep.subr.mxu0 0.0
    %79 = vmatpush1.msra.mxu0 0.0
    %80 = vmatprep.subr.mxu0 0.0
    %81 = vmatpush1.msra.mxu0 0.0
    %82 = vmatprep.subr.mxu0 0.0
    %83 = vmatpush1.msra.mxu0 0.0
    %84 = vmatprep.subr.mxu0 0.0
    %85 = vmatpush1.msra.mxu0 0.0
    %86 = vmatprep.subr.mxu0 0.0
    %87 = vmatpush1.msra.mxu0 0.0
    %88 = vmatprep.subr.mxu0 0.0
    %89 = vmatpush1.msra.mxu0 0.0
    %90 = vmatprep.subr.mxu0 0.0
    %91 = vmatpush1.msra.mxu0 0.0
    %92 = vmatprep.subr.mxu0 0.0
    %93 = vmatpush1.msra.mxu0 0.0
    %94 = vmatprep.subr.mxu0 0.0
    %95 = vmatpush1.msra.mxu0 0.0
    %96 = vmatprep.subr.mxu0 0.0
    %97 = vmatpush1.msra.mxu0 0.0
    %98 = vmatprep.subr.mxu0 0.0
    %99 = vmatpush1.msra.mxu0 0.0
    %100 = vmatprep.subr.mxu0 0.0
    %101 = vmatpush1.msra.mxu0 0.0
    %102 = vmatprep.subr.mxu0 0.0
    %103 = vmatpush1.msra.mxu0 0.0
    %104 = vmatprep.subr.mxu0 0.0
    %105 = vmatpush1.msra.mxu0 0.0
    %106 = vmatprep.subr.mxu0 0.0
    %107 = vmatpush1.msra.mxu0 0.0
    %108 = vmatprep.subr.mxu0 0.0
    %109 = vmatpush1.msra.mxu0 0.0
    %110 = vmatprep.subr.mxu0 0.0
    %111 = vmatpush1.msra.mxu0 0.0
    %112 = vmatprep.subr.mxu0 0.0
    %113 = vmatpush1.msra.mxu0 0.0
    %114 = vmatprep.subr.mxu0 0.0
    %115 = vmatpush1.msra.mxu0 0.0
    %116 = vmatprep.subr.mxu0 0.0
    %117 = vmatpush1.msra.mxu0 0.0
    %118 = vmatprep.subr.mxu0 0.0
    %119 = vmatpush1.msra.mxu0 0.0
    %120 = vmatprep.subr.mxu0 0.0
    %121 = vmatpush1.msra.mxu0 0.0
    %122 = vmatprep.subr.mxu0 0.0
    %123 = vmatpush1.msra.mxu0 0.0
    %124 = vmatprep.mubr.f32.mxu0 0.0
    %125 = vmatmul.mubr.f32.gmra.mrb[0].mxu0 %v58
    %v126 = vpop.f32.mrb[0].mxu0
    %v127 = vadd.f32 %v54, %v126
    %v128 = vpop.f32.mrb[0].mxu0
    %129 = vdwg.mxu0
    %v130 = vmax.f32 %v127, 0.0
    %v131 = vld [vmem:[%s3] sm:$0xff]
    %v132 = vld [vmem:[%s3 + $0x8] sm:$0xff]
    %v133 = vld [vmem:[%s3 + $0x10] sm:$0xff]
    %v134 = vld [vmem:[%s3 + $0x18] sm:$0xff]
    %v135 = vld [vmem:[%s3 + $0x20] sm:$0xff]
    %v136 = vld [vmem:[%s3 + $0x28] sm:$0xff]
    %v137 = vld [vmem:[%s3 + $0x30] sm:$0xff]
    %v138 = vld [vmem:[%s3 + $0x38] sm:$0xff]
    %v139 = vld [vmem:[%s3 + $0x40] sm:$0xff]
    %v140 = vld [vmem:[%s3 + $0x48] sm:$0xff]
    %v141 = vld [vmem:[%s3 + $0x50] sm:$0xff]
    %v142 = vld [vmem:[%s3 + $0x58] sm:$0xff]
    %v143 = vld [vmem:[%s3 + $0x60] sm:$0xff]
    %v144 = vld [vmem:[%s3 + $0x68] sm:$0xff]
    %v145 = vld [vmem:[%s3 + $0x70] sm:$0xff]
    %v146 = vld [vmem:[%s3 + $0x78] sm:$0xff]
    %v147 = vld [vmem:[%s4] sm:$0x1]
    %v149 = vlaneseq
    %v150 = vshrl.u32 %v149, 7
    %v151 = vsub.s32 0, %v150
    %v152 = vrot.slane %v147, %v151
    %154 = vmatprep.subr.mxu0 0.0
    %155 = vmatpush1.msra.mxu0 %v131
    %156 = vmatprep.subr.mxu0 0.0
    %157 = vmatpush1.msra.mxu0 %v132
    %158 = vmatprep.subr.mxu0 0.0
    %159 = vmatpush1.msra.mxu0 %v133
    %160 = vmatprep.subr.mxu0 0.0
    %161 = vmatpush1.msra.mxu0 %v134
    %162 = vmatprep.subr.mxu0 0.0
    %163 = vmatpush1.msra.mxu0 %v135
    %164 = vmatprep.subr.mxu0 0.0
    %165 = vmatpush1.msra.mxu0 %v136
    %166 = vmatprep.subr.mxu0 0.0
    %167 = vmatpush1.msra.mxu0 %v137
    %168 = vmatprep.subr.mxu0 0.0
    %169 = vmatpush1.msra.mxu0 %v138
    %170 = vmatprep.subr.mxu0 0.0
    %171 = vmatpush1.msra.mxu0 %v139
    %172 = vmatprep.subr.mxu0 0.0
    %173 = vmatpush1.msra.mxu0 %v140
    %174 = vmatprep.subr.mxu0 0.0
    %175 = vmatpush1.msra.mxu0 %v141
    %176 = vmatprep.subr.mxu0 0.0
    %177 = vmatpush1.msra.mxu0 %v142
    %178 = vmatprep.subr.mxu0 0.0
    %179 = vmatpush1.msra.mxu0 %v143
    %180 = vmatprep.subr.mxu0 0.0
    %181 = vmatpush1.msra.mxu0 %v144
    %182 = vmatprep.subr.mxu0 0.0
    %183 = vmatpush1.msra.mxu0 %v145
    %184 = vmatprep.subr.mxu0 0.0
    %185 = vmatpush1.msra.mxu0 %v146
    %186 = vmatprep.subr.mxu0 0.0
    %187 = vmatpush1.msra.mxu0 0.0
    %188 = vmatprep.subr.mxu0 0.0
    %189 = vmatpush1.msra.mxu0 0.0
    %190 = vmatprep.subr.mxu0 0.0
    %191 = vmatpush1.msra.mxu0 0.0
    %192 = vmatprep.subr.mxu0 0.0
    %193 = vmatpush1.msra.mxu0 0.0
    %194 = vmatprep.subr.mxu0 0.0
    %195 = vmatpush1.msra.mxu0 0.0
    %196 = vmatprep.subr.mxu0 0.0
    %197 = vmatpush1.msra.mxu0 0.0
    %198 = vmatprep.subr.mxu0 0.0
    %199 = vmatpush1.msra.mxu0 0.0
    %200 = vmatprep.subr.mxu0 0.0
    %201 = vmatpush1.msra.mxu0 0.0
    %202 = vmatprep.subr.mxu0 0.0
    %203 = vmatpush1.msra.mxu0 0.0
    %204 = vmatprep.subr.mxu0 0.0
    %205 = vmatpush1.msra.mxu0 0.0
    %206 = vmatprep.subr.mxu0 0.0
    %207 = vmatpush1.msra.mxu0 0.0
    %208 = vmatprep.subr.mxu0 0.0
    %209 = vmatpush1.msra.mxu0 0.0
    %210 = vmatprep.subr.mxu0 0.0
    %211 = vmatpush1.msra.mxu0 0.0
    %212 = vmatprep.subr.mxu0 0.0
    %213 = vmatpush1.msra.mxu0 0.0
    %214 = vmatprep.subr.mxu0 0.0
    %215 = vmatpush1.msra.mxu0 0.0
    %216 = vmatprep.subr.mxu0 0.0
    %217 = vmatpush1.msra.mxu0 0.0
    %218 = vmatprep.mubr.f32.mxu0 0.0
    %219 = vmatmul.mubr.f32.gmra.mrb[0].mxu0 %v130
    %v220 = vpop.f32.mrb[0].mxu0
    %v221 = vadd.f32 %v152, %v220
    %v222 = vpop.f32.mrb[0].mxu0
    %223 = vdwg.mxu0
    %v224 = vmax.f32 %v221, 0.0
    %v225 = vld [vmem:[%s5] sm:$0xff]
    %v226 = vld [vmem:[%s5 + $0x8] sm:$0xff]
    %v227 = vld [vmem:[%s5 + $0x10] sm:$0xff]
    %v228 = vld [vmem:[%s5 + $0x18] sm:$0xff]
    %v229 = vld [vmem:[%s5 + $0x20] sm:$0xff]
    %v230 = vld [vmem:[%s5 + $0x28] sm:$0xff]
    %v231 = vld [vmem:[%s5 + $0x30] sm:$0xff]
    %v232 = vld [vmem:[%s5 + $0x38] sm:$0xff]
    %v233 = vld [vmem:[%s5 + $0x40] sm:$0xff]
    %v234 = vld [vmem:[%s5 + $0x48] sm:$0xff]
    %v235 = vld [vmem:[%s5 + $0x50] sm:$0xff]
    %v236 = vld [vmem:[%s5 + $0x58] sm:$0xff]
    %v237 = vld [vmem:[%s5 + $0x60] sm:$0xff]
    %v238 = vld [vmem:[%s5 + $0x68] sm:$0xff]
    %v239 = vld [vmem:[%s5 + $0x70] sm:$0xff]
    %v240 = vld [vmem:[%s5 + $0x78] sm:$0xff]
    %v241 = vld [vmem:[%s6] sm:$0x1]
    %v243 = vlaneseq
    %v244 = vshrl.u32 %v243, 7
    %v245 = vsub.s32 0, %v244
    %v246 = vrot.slane %v241, %v245
    %248 = vmatprep.subr.mxu0 0.0
    %249 = vmatpush1.msra.mxu0 %v225
    %250 = vmatprep.subr.mxu0 0.0
    %251 = vmatpush1.msra.mxu0 %v226
    %252 = vmatprep.subr.mxu0 0.0
    %253 = vmatpush1.msra.mxu0 %v227
    %254 = vmatprep.subr.mxu0 0.0
    %255 = vmatpush1.msra.mxu0 %v228
    %256 = vmatprep.subr.mxu0 0.0
    %257 = vmatpush1.msra.mxu0 %v229
    %258 = vmatprep.subr.mxu0 0.0
    %259 = vmatpush1.msra.mxu0 %v230
    %260 = vmatprep.subr.mxu0 0.0
    %261 = vmatpush1.msra.mxu0 %v231
    %262 = vmatprep.subr.mxu0 0.0
    %263 = vmatpush1.msra.mxu0 %v232
    %264 = vmatprep.subr.mxu0 0.0
    %265 = vmatpush1.msra.mxu0 %v233
    %266 = vmatprep.subr.mxu0 0.0
    %267 = vmatpush1.msra.mxu0 %v234
    %268 = vmatprep.subr.mxu0 0.0
    %269 = vmatpush1.msra.mxu0 %v235
    %270 = vmatprep.subr.mxu0 0.0
    %271 = vmatpush1.msra.mxu0 %v236
    %272 = vmatprep.subr.mxu0 0.0
    %273 = vmatpush1.msra.mxu0 %v237
    %274 = vmatprep.subr.mxu0 0.0
    %275 = vmatpush1.msra.mxu0 %v238
    %276 = vmatprep.subr.mxu0 0.0
    %277 = vmatpush1.msra.mxu0 %v239
    %278 = vmatprep.subr.mxu0 0.0
    %279 = vmatpush1.msra.mxu0 %v240
    %280 = vmatprep.subr.mxu0 0.0
    %281 = vmatpush1.msra.mxu0 0.0
    %282 = vmatprep.subr.mxu0 0.0
    %283 = vmatpush1.msra.mxu0 0.0
    %284 = vmatprep.subr.mxu0 0.0
    %285 = vmatpush1.msra.mxu0 0.0
    %286 = vmatprep.subr.mxu0 0.0
    %287 = vmatpush1.msra.mxu0 0.0
    %288 = vmatprep.subr.mxu0 0.0
    %289 = vmatpush1.msra.mxu0 0.0
    %290 = vmatprep.subr.mxu0 0.0
    %291 = vmatpush1.msra.mxu0 0.0
    %292 = vmatprep.subr.mxu0 0.0
    %293 = vmatpush1.msra.mxu0 0.0
    %294 = vmatprep.subr.mxu0 0.0
    %295 = vmatpush1.msra.mxu0 0.0
    %296 = vmatprep.subr.mxu0 0.0
    %297 = vmatpush1.msra.mxu0 0.0
    %298 = vmatprep.subr.mxu0 0.0
    %299 = vmatpush1.msra.mxu0 0.0
    %300 = vmatprep.subr.mxu0 0.0
    %301 = vmatpush1.msra.mxu0 0.0
    %302 = vmatprep.subr.mxu0 0.0
    %303 = vmatpush1.msra.mxu0 0.0
    %304 = vmatprep.subr.mxu0 0.0
    %305 = vmatpush1.msra.mxu0 0.0
    %306 = vmatprep.subr.mxu0 0.0
    %307 = vmatpush1.msra.mxu0 0.0
    %308 = vmatprep.subr.mxu0 0.0
    %309 = vmatpush1.msra.mxu0 0.0
    %310 = vmatprep.subr.mxu0 0.0
    %311 = vmatpush1.msra.mxu0 0.0
    %312 = vmatprep.mubr.f32.mxu0 0.0
    %313 = vmatmul.mubr.f32.gmra.mrb[0].mxu0 %v224
    %v314 = vpop.f32.mrb[0].mxu0
    %v315 = vadd.f32 %v246, %v314
    %v316 = vpop.f32.mrb[0].mxu0
    %317 = vdwg.mxu0
    %vm318 = vcmask 123904
    %319 = vst.msk [vmem:[#allocation5] sm:$0x3] %vm318, %v315
    %vm320 = vcmask 402432
    %321 = vst.msk [vmem:[#allocation6] sm:$0x3] %vm320, %v224
    // Predicated region
    $region34: #{tpu_custom_call.1} parent=1 // pred_check
      _
    $region35: #{tpu_custom_call.1} parent=1 // pred_check_branch
      %323 = sbr.rel (0) target = $region37
    $region36: #{tpu_custom_call.1} parent=1 // pred_region
      %s325 = ssub.s32 32, 32
      %326 = vsyncadd [#allocation4], %s325
      %s328 = sshll.u32 [#allocation5], 4
      %s329 = int_to_ptr.vmem [resolvable:$true] %s328
      %331 = dma.vmem_to_hbm [thread:$0]  %s329, 32, %s7, [#allocation4]
    $region37: #{tpu_custom_call.1} parent=1 // pred_fallthru
      _
    // Predicated region
    $region38: #{tpu_custom_call.1} parent=1 // pred_check
      _
    $region39: #{tpu_custom_call.1} parent=1 // pred_check_branch
      %333 = sbr.rel (0) target = $region41
    $region40: #{tpu_custom_call.1} parent=1 // pred_region
      %s335 = ssub.s32 32, 32
      %336 = vsyncadd [#allocation7], %s335
      %s338 = sshll.u32 [#allocation6], 4
      %s339 = int_to_ptr.vmem [resolvable:$true] %s338
      %341 = dma.vmem_to_hbm [thread:$0]  %s339, 32, %s8, [#allocation7]
    $region41: #{tpu_custom_call.1} parent=1 // pred_fallthru
      _
    // Predicated region
    $region42: #{tpu_custom_call.1} parent=1 // pred_check
      _
    $region43: #{tpu_custom_call.1} parent=1 // pred_check_branch
      %343 = sbr.rel (0) target = $region45
    $region44: #{tpu_custom_call.1} parent=1 // pred_region
      %344 = dma.done [#allocation4], 32
    $region45: #{tpu_custom_call.1} parent=1 // pred_fallthru
      _
    // Predicated region
    $region46: #{tpu_custom_call.1} parent=1 // pred_check
      _
    $region47: #{tpu_custom_call.1} parent=1 // pred_check_branch
      %346 = sbr.rel (0) target = $region49
    $region48: #{tpu_custom_call.1} parent=1 // pred_region
      %347 = dma.done [#allocation7], 32
    $region49: #{tpu_custom_call.1} parent=1 // pred_fallthru
      _
    %348 = vsyncpa [#allocation3], 1
    %349 = vsyncpa [#allocation4], 1
    %350 = vsyncpa [#allocation7], 1

</llo_original>
